<compile_context>
chip_gen: v6e
topology: v6e:2x2x1
jax: 0.10.0
libtpu: 0.0.40
codegen_flags: <defaults>
</compile_context>

<pallas_src>
import math

import jax
import jax.numpy as jnp
from jax.experimental import pallas as pl
from jax.experimental.pallas import tpu as pltpu


def _rel_scores_kernel(q_ref, relT_ref, o_ref):
    # q_ref:    (TN, D)   query-row tile
    # relT_ref: (D, TM)   pre-transposed relative-position embeddings
    # o_ref:    (TN, TM)  score tile
    o_ref[...] = jnp.dot(q_ref[...], relT_ref[...],
                         preferred_element_type=jnp.float32).astype(o_ref.dtype)


class BinaryRelativePositionEmbedding:
    """JAX/Pallas port of the PyTorch module (synthetic deterministic weights)."""

    def __init__(self, max_position_embeddings, hidden_size, key=None,
                 compute_dtype=jnp.float32, out_dtype=jnp.float32):
        n_positions = 2 * max_position_embeddings - 1
        self.n_bits = math.ceil(math.log2(n_positions))
        self.hidden_size = hidden_size
        self.compute_dtype = compute_dtype
        self.out_dtype = out_dtype

        if key is None:
            key = jax.random.PRNGKey(0)
        # nn.Embedding(n_bits+1, hidden_size) ~ N(0,1), L2-normalize each row, zero row 0
        # (exactly as BinaryPositionEmbedding.__init__ does).
        w = jax.random.normal(key, (self.n_bits + 1, hidden_size), dtype=jnp.float32)
        w = w / jnp.linalg.norm(w, axis=1, keepdims=True)
        w = w.at[0].set(0.0)
        self.weight = w  # (n_bits + 1, hidden_size)

    def _binary_repr(self, positions):
        # positions: int32 (M,).  Arithmetic right-shift gives two's-complement bits,
        # matching PyTorch's `x & (1 << b)` on signed longs for b < n_bits (< 32).
        bit_ids = jnp.arange(self.n_bits, dtype=jnp.int32)          # (n_bits,)
        bits = (positions[:, None] >> bit_ids[None, :]) & 1         # (M, n_bits)
        return bits.astype(jnp.float32)

    def _relative_embeddings(self, L):
        positions = jnp.arange(-L + 1, L, dtype=jnp.int32)          # (M,)
        bits = self._binary_repr(positions)                          # (M, n_bits)
        return bits @ self.weight[: self.n_bits]                     # (M, D) f32

    def __call__(self, q, k=None):
        # q, k: (B, H, L, D) with D == hidden_size.  k is unused (as in the PyTorch code).
        B, H, L, D = q.shape
        assert D == self.hidden_size
        M = 2 * L - 1

        # ---- tiny preprocessing, hoisted out of the kernel (plain XLA) ------------
        rel = self._relative_embeddings(L)                           # (M, D) f32
        relT = rel.T.astype(self.compute_dtype)                      # (D, M) lane-dense RHS

        # ---- flatten queries (free metadata reshape) -------------------------------
        N = B * H * L
        qf = q.reshape(N, D).astype(self.compute_dtype)

        # ---- tile selection ---------------------------------------------------------
        # TN: sublane-aligned row tile; ragged tail blocks are masked by Pallas.
        if N >= 512:
            TN = 512
        elif N >= 8:
            TN = (N // 8) * 8
        else:
            TN = N                                        # equal to full dim -> allowed
        # TM: full M when it fits (single resident relT tile), else 128-aligned tiles.
        TM = M if M <= 2048 else 2048
        grid = (pl.cdiv(M, TM), pl.cdiv(N, TN))           # N-axis innermost

        out_bytes = N * M * jnp.dtype(self.out_dtype).itemsize
        in_bytes = (grid[0] * qf.size * qf.dtype.itemsize            # q re-streamed per M-tile
                    + relT.size * relT.dtype.itemsize)               # relT loaded once
        cost = pl.CostEstimate(flops=2 * N * D * M, transcendentals=0,
                               bytes_accessed=in_bytes + out_bytes)

        out = pl.pallas_call(
            _rel_scores_kernel,
            out_shape=jax.ShapeDtypeStruct((N, M), self.out_dtype),
            grid=grid,
            in_specs=[
                pl.BlockSpec((TN, D), lambda j, i: (i, 0)),   # q tile (streams over inner i)
                pl.BlockSpec((D, TM), lambda j, i: (0, j)),   # relT tile (resident across i)
            ],
            out_specs=pl.BlockSpec((TN, TM), lambda j, i: (i, j)),
            compiler_params=pltpu.CompilerParams(
                dimension_semantics=("parallel", "parallel"),
                vmem_limit_bytes=32 * 1024 * 1024),
            cost_estimate=cost,
        )(qf, relT)

        # Contiguous (N, M) -> (B, H, L, M) is a free reshape (no copy, no slice).
        return out.reshape(B, H, L, M)


def _reference(module, q):
    """Pure-JAX reference at full precision."""
    B, H, L, D = q.shape
    rel = module._relative_embeddings(L)                              # (M, D) f32
    return jnp.einsum('bhld,md->bhlm', q.astype(jnp.float32), rel,
                      precision=jax.lax.Precision.HIGHEST)


if __name__ == "__main__":
    key = jax.random.PRNGKey(0)
    k_w, k_q, k_k = jax.random.split(key, 3)

    batch, heads, seq, dim = 2, 2, 8, 32
    # max_position_embeddings = seq_length + 1 (per the module docstring)
    module = BinaryRelativePositionEmbedding(max_position_embeddings=seq + 1,
                                             hidden_size=dim, key=k_w)

    q = jax.random.normal(k_q, (batch, heads, seq, dim), dtype=jnp.float32)
    k = jax.random.normal(k_k, (batch, heads, seq, dim), dtype=jnp.float32)

    scores = module(q, k)
    jax.block_until_ready(scores)

    M = 2 * seq - 1
    assert scores.shape == (batch, heads, seq, M)

    # Correctness check against the full-precision reference.  Tolerance covers possible
    # reduced-precision f32 MXU passes; semantic errors would be O(1), far outside it.
    ref = _reference(module, q)
    max_err = float(jnp.max(jnp.abs(scores - ref)))
    assert jnp.allclose(scores, ref, atol=2e-2, rtol=2e-2), max_err

    print("KERNEL_OK")
</pallas_src>

<mosaic_0001>
module attributes {stable_mosaic.version = 11 : i64} {
  func.func @_rel_scores_kernel(%arg0: i32, %arg1: i32, %arg2: memref<32x32xf32, #tpu.memory_space<vmem>>, %arg3: memref<32x15xf32, #tpu.memory_space<vmem>>, %arg4: memref<32x15xf32, #tpu.memory_space<vmem>>) attributes {dimension_semantics = [#tpu.dimension_semantics<parallel>, #tpu.dimension_semantics<parallel>], iteration_bounds = array<i64: 1, 1>, scalar_prefetch = 0 : i64, scratch_operands = 0 : i64, tpu.core_type = #tpu.core_type<tc>, window_params = [{transform_indices = @transform_0, window_bounds = array<i64: 32, 32>}, {transform_indices = @transform_1, window_bounds = array<i64: 32, 15>}, {transform_indices = @transform_2, window_bounds = array<i64: 32, 15>}]} {
    %c0 = arith.constant 0 : index
    %c0_0 = arith.constant 0 : index
    %0 = vector.load %arg2[%c0, %c0_0] : memref<32x32xf32, #tpu.memory_space<vmem>>, vector<32x32xf32>
    %c0_1 = arith.constant 0 : index
    %c0_2 = arith.constant 0 : index
    %1 = vector.load %arg3[%c0_1, %c0_2] : memref<32x15xf32, #tpu.memory_space<vmem>>, vector<32x15xf32>
    %cst = arith.constant dense<0.000000e+00> : vector<32x15xf32>
    %2 = tpu.matmul %0, %1, %cst {dimension_numbers = #tpu.dot_dimension_numbers<[1], [0], [0], [1], [0, 0, 1, 1], [], []>} : vector<32x32xf32>, vector<32x15xf32>, vector<32x15xf32> -> vector<32x15xf32>
    %c0_3 = arith.constant 0 : index
    %c0_4 = arith.constant 0 : index
    %3 = vector.load %arg4[%c0_3, %c0_4] : memref<32x15xf32, #tpu.memory_space<vmem>>, vector<32x15xf32>
    tpu.vector_store %arg4[%c0_3, %c0_4], %2 {strides = array<i32>} : memref<32x15xf32, #tpu.memory_space<vmem>>, vector<32x15xf32>,
    return
  }
  func.func @transform_0(%arg0: i32, %arg1: i32) -> (i32, i32) {
    %c0_i32 = arith.constant 0 : i32
    %c0_i32_0 = arith.constant 0 : i32
    return %arg1, %c0_i32 : i32, i32
  }
  func.func @transform_1(%arg0: i32, %arg1: i32) -> (i32, i32) {
    %c0_i32 = arith.constant 0 : i32
    %c0_i32_0 = arith.constant 0 : i32
    return %c0_i32, %arg0 : i32, i32
  }
  func.func @transform_2(%arg0: i32, %arg1: i32) -> (i32, i32) {
    %c0_i32 = arith.constant 0 : i32
    return %arg1, %arg0 : i32, i32
  }
}

</mosaic_0001>

<llo_original>
// kernel: tpu_custom_call.1
$region0: #{tpu_custom_call.1}
  #allocation0 [shape = 'u32[]', space=smem, size = 0x4, offset = 0x4, fixed_abs, tag = 'smem constant byte address 0x4 - core index']
  #allocation1 [shape = 'u32[144,128]{1,0:T(1,128)}', space=vmem, size = 0x12000, scoped, tag = 'internal scratch']
  %s0 = inlined_call_operand.vmem [shape: f32[32,32], index: 0, kind: input, shape index: {}]
  %s1 = inlined_call_operand.vmem [shape: f32[32,15], index: 1, kind: input, shape index: {}]
  %s2 = inlined_call_operand.vmem [shape: f32[32,15], index: 2, kind: output, shape index: {}]
  %s3 = sld [smem:[#allocation0]]
  $region18: #{tpu_custom_call.1} parent=0
    _
  %s5 = ssub.s32 1, %s3
  %s6 = scalar_select 0, %s5, %s3
  // Predicated region
  $region2: #{tpu_custom_call.1} parent=0 // pred_check
    _
  $region3: #{tpu_custom_call.1} parent=0 // pred_check_branch
    %8 = sbr.rel (0) target = $region5
  $region4: #{tpu_custom_call.1} parent=0 // pred_region
    _
  $region5: #{tpu_custom_call.1} parent=0 // pred_fallthru
    _
  // Predicated region
  $region6: #{tpu_custom_call.1} parent=0 // pred_check
    _
  $region7: #{tpu_custom_call.1} parent=0 // pred_check_branch
    %10 = sbr.rel (0) target = $region9
  $region8: #{tpu_custom_call.1} parent=0 // pred_region
    _
  $region9: #{tpu_custom_call.1} parent=0 // pred_fallthru
    _
  %v11 = vld [vmem:[%s0] sm:$0xff]
  %v12 = vld [vmem:[%s0 + $0x8] sm:$0xff]
  %v13 = vld [vmem:[%s0 + $0x10] sm:$0xff]
  %v14 = vld [vmem:[%s0 + $0x18] sm:$0xff]
  %v15 = vld [vmem:[%s1] sm:$0xff]
  %v16 = vld [vmem:[%s1 + $0x8] sm:$0xff]
  %v17 = vld [vmem:[%s1 + $0x10] sm:$0xff]
  %v18 = vld [vmem:[%s1 + $0x18] sm:$0xff]
  %vm19 = vcmask 261120
  %v21 = vsel %vm19, %v11, 0
  %v24 = vsel %vm19, %v12, 0
  %v27 = vsel %vm19, %v13, 0
  %v30 = vsel %vm19, %v14, 0
  %32 = vmatprep.subr.mxu0 0.0
  %33 = vmatpush1.msra.mxu0 0.0
  %34 = vmatprep.subr.mxu0 0.0
  %35 = vmatpush1.msra.mxu0 0.0
  %36 = vmatprep.subr.mxu0 0.0
  %37 = vmatpush1.msra.mxu0 0.0
  %38 = vmatprep.subr.mxu0 0.0
  %39 = vmatpush1.msra.mxu0 0.0
  %40 = vmatprep.subr.mxu0 0.0
  %41 = vmatpush1.msra.mxu0 0.0
  %42 = vmatprep.subr.mxu0 0.0
  %43 = vmatpush1.msra.mxu0 0.0
  %44 = vmatprep.subr.mxu0 0.0
  %45 = vmatpush1.msra.mxu0 0.0
  %46 = vmatprep.subr.mxu0 0.0
  %47 = vmatpush1.msra.mxu0 0.0
  %48 = vmatprep.subr.mxu0 0.0
  %49 = vmatpush1.msra.mxu0 0.0
  %50 = vmatprep.subr.mxu0 0.0
  %51 = vmatpush1.msra.mxu0 0.0
  %52 = vmatprep.subr.mxu0 0.0
  %53 = vmatpush1.msra.mxu0 0.0
  %54 = vmatprep.subr.mxu0 0.0
  %55 = vmatpush1.msra.mxu0 0.0
  %56 = vmatprep.subr.mxu0 0.0
  %57 = vmatpush1.msra.mxu0 %v18
  %58 = vmatprep.subr.mxu0 0.0
  %59 = vmatpush1.msra.mxu0 %v17
  %60 = vmatprep.subr.mxu0 0.0
  %61 = vmatpush1.msra.mxu0 %v16
  %62 = vmatprep.subr.mxu0 0.0
  %63 = vmatpush1.msra.mxu0 %v15
  %64 = vmatprep.subr.mxu0 0.0
  %65 = vmatpush2.msra.mxu0 0.0
  %66 = vmatprep.subr.mxu0 0.0
  %67 = vmatpush2.msra.mxu0 0.0
  %68 = vmatprep.subr.mxu0 0.0
  %69 = vmatpush2.msra.mxu0 0.0
  %70 = vmatprep.subr.mxu0 0.0
  %71 = vmatpush2.msra.mxu0 0.0
  %72 = vmatprep.subr.mxu0 0.0
  %73 = vmatpush2.msra.mxu0 0.0
  %74 = vmatprep.subr.mxu0 0.0
  %75 = vmatpush2.msra.mxu0 0.0
  %76 = vmatprep.subr.mxu0 0.0
  %77 = vmatpush2.msra.mxu0 0.0
  %78 = vmatprep.subr.mxu0 0.0
  %79 = vmatpush2.msra.mxu0 0.0
  %80 = vmatprep.subr.mxu0 0.0
  %81 = vmatpush2.msra.mxu0 0.0
  %82 = vmatprep.subr.mxu0 0.0
  %83 = vmatpush2.msra.mxu0 0.0
  %84 = vmatprep.subr.mxu0 0.0
  %85 = vmatpush2.msra.mxu0 0.0
  %86 = vmatprep.subr.mxu0 0.0
  %87 = vmatpush2.msra.mxu0 0.0
  %88 = vmatprep.subr.mxu0 0.0
  %89 = vmatpush2.msra.mxu0 0.0
  %90 = vmatprep.subr.mxu0 0.0
  %91 = vmatpush2.msra.mxu0 0.0
  %92 = vmatprep.subr.mxu0 0.0
  %93 = vmatpush2.msra.mxu0 0.0
  %94 = vmatprep.subr.mxu0 0.0
  %95 = vmatpush2.msra.mxu0 0.0
  %96 = vmatprep.mubr.f32.mxu0 0.0
  %97 = vmatmul.mubr.f32.gmra.mxu0 %v21
  %v98 = vpop.f32.mrf.mxu0
  %v99 = vadd.f32 0.0, %v98
  %v100 = vpop.f32.mrf.mxu0
  %101 = vmatprep.mubr.f32.mxu0 0.0
  %102 = vmatmul.mubr.f32.gmra.mxu0 %v24
  %v103 = vpop.f32.mrf.mxu0
  %v104 = vadd.f32 0.0, %v103
  %v105 = vpop.f32.mrf.mxu0
  %106 = vmatprep.mubr.f32.mxu0 0.0
  %107 = vmatmul.mubr.f32.gmra.mxu0 %v27
  %v108 = vpop.f32.mrf.mxu0
  %v109 = vadd.f32 0.0, %v108
  %v110 = vpop.f32.mrf.mxu0
  %111 = vmatprep.mubr.f32.mxu0 0.0
  %112 = vmatmul.mubr.f32.gmra.mxu0 %v30
  %v113 = vpop.f32.mrf.mxu0
  %v114 = vadd.f32 0.0, %v113
  %v115 = vpop.f32.mrf.mxu0
  %116 = vdwg.mxu0
  %vm117 = vcmask 121856
  %118 = vst.msk [vmem:[%s2] sm:$0xff] %vm117, %v99
  %119 = vst.msk [vmem:[%s2 + $0x8] sm:$0xff] %vm117, %v104
  %120 = vst.msk [vmem:[%s2 + $0x10] sm:$0xff] %vm117, %v109
  %121 = vst.msk [vmem:[%s2 + $0x18] sm:$0xff] %vm117, %v114
  // Predicated region
  $region10: #{tpu_custom_call.1} parent=0 // pred_check
    _
  $region11: #{tpu_custom_call.1} parent=0 // pred_check_branch
    %123 = sbr.rel (0) target = $region13
  $region12: #{tpu_custom_call.1} parent=0 // pred_region
    _
  $region13: #{tpu_custom_call.1} parent=0 // pred_fallthru
    _
  // Predicated region
  $region14: #{tpu_custom_call.1} parent=0 // pred_check
    _
  $region15: #{tpu_custom_call.1} parent=0 // pred_check_branch
    %125 = sbr.rel (0) target = $region17
  $region16: #{tpu_custom_call.1} parent=0 // pred_region
    _
  $region17: #{tpu_custom_call.1} parent=0 // pred_fallthru
    _

</llo_original>
